<compile_context>
chip_gen: v7x
topology: tpu7x:2x2x1
jax: 0.10.0
libtpu: 0.0.40
codegen_flags: <defaults>
</compile_context>

<pallas_src>
from typing import Dict, List

import jax
import jax.numpy as jnp
from jax.experimental import pallas as pl
from jax.experimental.pallas import tpu as pltpu

_LANE = 128          # output padded to a lane-dense multiple of 128
_EPS = 1e-5          # PyTorch nn.LayerNorm default

# Flipped to False once (and only if) pl.Buffered(1) is rejected by this build.
_SINGLE_BUFFER_OK = True


def _round_up(x: int, m: int) -> int:
    return ((x + m - 1) // m) * m


# ----------------------------- Pallas kernel ------------------------------- #
def _trend_head_kernel(x_ref, w1_ref, b1_ref, g_ref, beta_ref, wh_ref, bh_ref,
                       out_ref):
    """Fused: (x @ W1 + b1) -> LayerNorm -> ReLU -> (@ W_heads + b_heads)."""
    # In-kernel cast to bf16 (avoids a separate wrapper-side HBM cast pass).
    x = x_ref[...].astype(jnp.bfloat16)                          # [TB, D]
    # Shared linear (MXU, bf16 inputs, f32 accumulate)
    h = jnp.dot(x, w1_ref[...], preferred_element_type=jnp.float32) + b1_ref[...]
    # LayerNorm over hidden dim, float32 (population variance, eps=1e-5).
    mean = jnp.mean(h, axis=-1, keepdims=True)
    cent = h - mean
    var = jnp.mean(cent * cent, axis=-1, keepdims=True)
    # eps must stay inside rsqrt: zero-padded batch rows have var == 0.
    hn = cent * jax.lax.rsqrt(var + _EPS)
    hn = hn * g_ref[...] + beta_ref[...]
    # ReLU; dropout is identity in eval mode.
    hn = jnp.maximum(hn, 0.0)
    # All horizon classification heads fused into one lane-dense matmul (MXU).
    out = jnp.dot(hn.astype(wh_ref.dtype), wh_ref[...],
                  preferred_element_type=jnp.float32) + bh_ref[...]
    out_ref[...] = out.astype(out_ref.dtype)                     # bf16 store


# ------------------------------ Tiling logic -------------------------------- #
def _choose_tb(B: int, D: int, O: int, *, tb_cap: int = 1024,
               stream_budget_bytes: int = 12 << 20) -> int:
    """Pick the batch tile:
      (a) double-buffered streaming tiles (f32 x + bf16 out) fit a budget that
          stays under every generation's default scoped VMEM (16 MiB on v5e,
          32 MiB on v6e/v7x),
      (b) at least 2 grid steps when B >= 32 so ("parallel",) shards across
          both v7x TensorCores,
      (c) prefer a tile that divides B exactly so no batch padding is needed.
    """
    if B < 32:
        return B                                  # single full-array block
    per_row = 2 * D * 4 + 2 * O * 2               # 2-buffered x(f32) + out(bf16)
    tb = min(tb_cap, max(16, stream_budget_bytes // per_row))
    tb = min(tb, _round_up(pl.cdiv(B, 2), 16))    # >= 2 grid steps
    tb = max(16, (tb // 16) * 16)
    for cand in range(tb, 15, -16):               # prefer an exact divisor of B
        if B % cand == 0:
            return cand
    return tb


def _fused_forward(x, w1, b1, gamma, beta, w_heads, b_heads, *, tb_cap: int = 1024):
    """x: [B, D] float. Returns padded logits slab [B, O_pad] in bfloat16."""
    global _SINGLE_BUFFER_OK

    B, D = x.shape
    H = w1.shape[1]
    O = w_heads.shape[1]                          # already a multiple of 128

    TB = _choose_tb(B, D, O, tb_cap=tb_cap)
    Bp = _round_up(B, TB)
    if Bp != B:
        # Padded rows are independent (per-row LayerNorm, eps>0) and discarded.
        x = jnp.pad(x, ((0, Bp - B), (0, 0)))
    grid = (Bp // TB,)

    x_itemsize = jnp.dtype(x.dtype).itemsize
    weight_bytes = D * H * 2 + H * O * 2 + 3 * H * 4 + O * 4
    stream_bytes = 2 * TB * D * x_itemsize + 2 * TB * O * 2
    vmem_limit = int(max(8 << 20,
                         min(64 << 20,
                             int(1.5 * (stream_bytes + 2 * weight_bytes)) + (2 << 20))))

    cost = pl.CostEstimate(
        flops=2 * Bp * (D * H + H * O),
        transcendentals=Bp,                       # one rsqrt per row
        bytes_accessed=(Bp * D * x_itemsize       # stream x in native dtype
                        + Bp * O * 2              # bf16 output slab
                        + weight_bytes),
    )

    def _call(single_buffer_weights: bool):
        if single_buffer_weights:
            def rspec(shape):
                return pl.BlockSpec(shape, lambda i: (0, 0),
                                    pipeline_mode=pl.Buffered(1))
        else:
            def rspec(shape):
                return pl.BlockSpec(shape, lambda i: (0, 0))

        fn = pl.pallas_call(
            _trend_head_kernel,
            out_shape=jax.ShapeDtypeStruct((Bp, O), jnp.bfloat16),
            grid=grid,
            in_specs=[
                pl.BlockSpec((TB, D), lambda i: (i, 0)),   # x: streamed per tile
                rspec((D, H)),                             # w1: resident
                rspec((1, H)),                             # b1: resident
                rspec((1, H)),                             # gamma: resident
                rspec((1, H)),                             # beta: resident
                rspec((H, O)),                             # w_heads: resident
                rspec((1, O)),                             # b_heads: resident
            ],
            out_specs=pl.BlockSpec((TB, O), lambda i: (i, 0)),
            compiler_params=pltpu.CompilerParams(
                dimension_semantics=("parallel",),         # megacore on v7x
                vmem_limit_bytes=vmem_limit,
            ),
            cost_estimate=cost,
        )
        out = fn(x, w1, b1, gamma, beta, w_heads, b_heads)
        return jax.block_until_ready(out)

    if _SINGLE_BUFFER_OK:
        try:
            return _call(True)[:B]
        except Exception:
            # Buffered(1) not accepted by this jax build -> default buffering.
            _SINGLE_BUFFER_OK = False
    return _call(False)[:B]


# ----------------------------- Module wrapper ------------------------------ #
class TrendClassificationHeadPallas:
    def __init__(self, d_model: int, horizons: List[int] = (1, 5, 10, 20),
                 num_classes: int = 3, hidden_dim: int = 128,
                 dropout: float = 0.1, *, key: jax.Array, batch_tile: int = 1024):
        self.horizons = list(horizons)
        self.num_classes = num_classes
        self.hidden_dim = hidden_dim
        self.batch_tile = batch_tile
        # TODO(synk): dropout is identity here (eval/inference semantics only).

        keys = jax.random.split(key, 1 + len(self.horizons))

        def linear_init(k, fan_in, fan_out):
            # PyTorch nn.Linear default init: U(-1/sqrt(fan_in), 1/sqrt(fan_in))
            kw, kb = jax.random.split(k)
            bound = 1.0 / jnp.sqrt(fan_in)
            w = jax.random.uniform(kw, (fan_in, fan_out), jnp.float32, -bound, bound)
            b = jax.random.uniform(kb, (fan_out,), jnp.float32, -bound, bound)
            return w, b

        # Shared layer params (w1 stored bf16; LayerNorm params f32)
        w1, b1 = linear_init(keys[0], d_model, hidden_dim)
        self.w1 = w1.astype(jnp.bfloat16)
        self.b1 = b1.reshape(1, hidden_dim)
        self.gamma = jnp.ones((1, hidden_dim), jnp.float32)
        self.beta = jnp.zeros((1, hidden_dim), jnp.float32)

        # Per-horizon classification heads, concatenated column-wise, then
        # zero-padded to a lane-dense 128-wide output slab (kept at 128, NOT
        # 256: the kernel is memory-bound, wider output = more writeback).
        ws, bs = [], []
        for i, _h in enumerate(self.horizons):
            wc, bc = linear_init(keys[1 + i], hidden_dim, num_classes)
            ws.append(wc)
            bs.append(bc)
        w_heads = jnp.concatenate(ws, axis=1)                    # [H, O_real]
        b_heads = jnp.concatenate(bs, axis=0)                    # [O_real]
        self.out_real = w_heads.shape[1]
        self.out_pad = _round_up(max(self.out_real, _LANE), _LANE)
        pad = self.out_pad - self.out_real
        self.w_heads = jnp.pad(w_heads, ((0, 0), (0, pad))).astype(jnp.bfloat16)
        self.b_heads = jnp.pad(b_heads, (0, pad)).reshape(1, -1)  # f32

    def __call__(self, x: jax.Array) -> Dict[str, jax.Array]:
        out = _fused_forward(x, self.w1, self.b1, self.gamma, self.beta,
                             self.w_heads, self.b_heads, tb_cap=self.batch_tile)
        # Slice per-horizon logits out of the bf16 slab; upcast to f32 to keep
        # the module's output dtype contract.
        logits = {}
        for i, h in enumerate(self.horizons):
            base = i * self.num_classes
            logits[f"h{h}"] = out[:, base:base + self.num_classes].astype(jnp.float32)
        return logits

    # Pure-JAX reference with identical (bf16-quantized) parameters / casts.
    def reference(self, x: jax.Array) -> Dict[str, jax.Array]:
        xb = x.astype(jnp.bfloat16).astype(jnp.float32)
        h = xb @ self.w1.astype(jnp.float32) + self.b1
        mean = jnp.mean(h, axis=-1, keepdims=True)
        var = jnp.mean((h - mean) ** 2, axis=-1, keepdims=True)
        hn = (h - mean) * jax.lax.rsqrt(var + _EPS) * self.gamma + self.beta
        hn = jnp.maximum(hn, 0.0)
        hnq = hn.astype(jnp.bfloat16).astype(jnp.float32)   # kernel casts hn->bf16
        out = hnq @ self.w_heads.astype(jnp.float32) + self.b_heads
        logits = {}
        for i, hz in enumerate(self.horizons):
            base = i * self.num_classes
            logits[f"h{hz}"] = out[:, base:base + self.num_classes]
        return logits


# --------------------------------- Main ------------------------------------ #
if __name__ == "__main__":
    key = jax.random.PRNGKey(0)
    k_param, k_x = jax.random.split(key)

    batch, d_model, hidden_dim = 8, 32, 128
    model = TrendClassificationHeadPallas(
        d_model=d_model, horizons=[1, 5, 10, 20], num_classes=3,
        hidden_dim=hidden_dim, dropout=0.1, key=k_param)

    x = jax.random.normal(k_x, (batch, d_model), jnp.float32)

    logits = model(x)
    jax.block_until_ready(logits)

    # Shape checks (module contract: dict of [batch, num_classes] logits)
    for h in [1, 5, 10, 20]:
        assert logits[f"h{h}"].shape == (batch, 3), logits[f"h{h}"].shape
        assert logits[f"h{h}"].dtype == jnp.float32

    # Numerical check vs pure-JAX reference (bf16 matmul / bf16 output tolerance)
    ref = model.reference(x)
    for h in [1, 5, 10, 20]:
        err = jnp.max(jnp.abs(logits[f"h{h}"] - ref[f"h{h}"]))
        assert err < 5e-2, (h, float(err))

    print("KERNEL_OK")
</pallas_src>

<mosaic_0001>
module attributes {stable_mosaic.version = 11 : i64} {
  func.func @_trend_head_kernel(%arg0: i32, %arg1: memref<8x32xf32, #tpu.memory_space<vmem>>, %arg2: memref<32x128xbf16, #tpu.memory_space<vmem>>, %arg3: memref<1x128xf32, #tpu.memory_space<vmem>>, %arg4: memref<1x128xf32, #tpu.memory_space<vmem>>, %arg5: memref<1x128xf32, #tpu.memory_space<vmem>>, %arg6: memref<128x128xbf16, #tpu.memory_space<vmem>>, %arg7: memref<1x128xf32, #tpu.memory_space<vmem>>, %arg8: memref<8x128xbf16, #tpu.memory_space<vmem>>) attributes {dimension_semantics = [#tpu.dimension_semantics<parallel>], iteration_bounds = array<i64: 1>, scalar_prefetch = 0 : i64, scratch_operands = 0 : i64, tpu.core_type = #tpu.core_type<tc>, window_params = [{transform_indices = @transform_0, window_bounds = array<i64: 8, 32>}, {pipeline_mode = #tpu.pipeline_mode<synchronous>, transform_indices = @transform_1, window_bounds = array<i64: 32, 128>}, {pipeline_mode = #tpu.pipeline_mode<synchronous>, transform_indices = @transform_2, window_bounds = array<i64: 1, 128>}, {pipeline_mode = #tpu.pipeline_mode<synchronous>, transform_indices = @transform_3, window_bounds = array<i64: 1, 128>}, {pipeline_mode = #tpu.pipeline_mode<synchronous>, transform_indices = @transform_4, window_bounds = array<i64: 1, 128>}, {pipeline_mode = #tpu.pipeline_mode<synchronous>, transform_indices = @transform_5, window_bounds = array<i64: 128, 128>}, {pipeline_mode = #tpu.pipeline_mode<synchronous>, transform_indices = @transform_6, window_bounds = array<i64: 1, 128>}, {transform_indices = @transform_7, window_bounds = array<i64: 8, 128>}]} {
    %c0 = arith.constant 0 : index
    %c0_0 = arith.constant 0 : index
    %0 = vector.load %arg1[%c0, %c0_0] : memref<8x32xf32, #tpu.memory_space<vmem>>, vector<8x32xf32>
    %1 = arith.truncf %0 : vector<8x32xf32> to vector<8x32xbf16>
    %c0_1 = arith.constant 0 : index
    %c0_2 = arith.constant 0 : index
    %2 = vector.load %arg2[%c0_1, %c0_2] : memref<32x128xbf16, #tpu.memory_space<vmem>>, vector<32x128xbf16>
    %cst = arith.constant dense<0.000000e+00> : vector<8x128xf32>
    %3 = tpu.matmul %1, %2, %cst {dimension_numbers = #tpu.dot_dimension_numbers<[1], [0], [0], [1], [0, 0, 1, 1], [], []>} : vector<8x32xbf16>, vector<32x128xbf16>, vector<8x128xf32> -> vector<8x128xf32>
    %c0_3 = arith.constant 0 : index
    %c0_4 = arith.constant 0 : index
    %4 = vector.load %arg3[%c0_3, %c0_4] : memref<1x128xf32, #tpu.memory_space<vmem>>, vector<1x128xf32>
    %5 = vector.broadcast %4 : vector<1x128xf32> to vector<8x128xf32>
    %6 = arith.addf %3, %5 : vector<8x128xf32>
    %cst_5 = arith.constant dense<0.000000e+00> : vector<8xf32>
    %7 = vector.multi_reduction <add>, %6, %cst_5 [1] : vector<8x128xf32> to vector<8xf32>
    %8 = vector.shape_cast %7 : vector<8xf32> to vector<8x1xf32>
    %cst_6 = arith.constant 1.280000e+02 : f32
    %9 = vector.broadcast %cst_6 : f32 to vector<8x1xf32>
    %10 = arith.divf %8, %9 : vector<8x1xf32>
    %11 = vector.broadcast %10 : vector<8x1xf32> to vector<8x128xf32>
    %12 = arith.subf %6, %11 : vector<8x128xf32>
    %13 = arith.mulf %12, %12 : vector<8x128xf32>
    %cst_7 = arith.constant dense<0.000000e+00> : vector<8xf32>
    %14 = vector.multi_reduction <add>, %13, %cst_7 [1] : vector<8x128xf32> to vector<8xf32>
    %15 = vector.shape_cast %14 : vector<8xf32> to vector<8x1xf32>
    %cst_8 = arith.constant 1.280000e+02 : f32
    %16 = vector.broadcast %cst_8 : f32 to vector<8x1xf32>
    %17 = arith.divf %15, %16 : vector<8x1xf32>
    %cst_9 = arith.constant 9.99999974E-6 : f32
    %18 = vector.broadcast %cst_9 : f32 to vector<8x1xf32>
    %19 = arith.addf %17, %18 : vector<8x1xf32>
    %20 = math.rsqrt %19 : vector<8x1xf32>
    %21 = vector.broadcast %20 : vector<8x1xf32> to vector<8x128xf32>
    %22 = arith.mulf %12, %21 : vector<8x128xf32>
    %c0_10 = arith.constant 0 : index
    %c0_11 = arith.constant 0 : index
    %23 = vector.load %arg4[%c0_10, %c0_11] : memref<1x128xf32, #tpu.memory_space<vmem>>, vector<1x128xf32>
    %24 = vector.broadcast %23 : vector<1x128xf32> to vector<8x128xf32>
    %25 = arith.mulf %22, %24 : vector<8x128xf32>
    %c0_12 = arith.constant 0 : index
    %c0_13 = arith.constant 0 : index
    %26 = vector.load %arg5[%c0_12, %c0_13] : memref<1x128xf32, #tpu.memory_space<vmem>>, vector<1x128xf32>
    %27 = vector.broadcast %26 : vector<1x128xf32> to vector<8x128xf32>
    %28 = arith.addf %25, %27 : vector<8x128xf32>
    %cst_14 = arith.constant 0.000000e+00 : f32
    %29 = vector.broadcast %cst_14 : f32 to vector<8x128xf32>
    %30 = arith.maximumf %28, %29 : vector<8x128xf32>
    %31 = arith.truncf %30 : vector<8x128xf32> to vector<8x128xbf16>
    %c0_15 = arith.constant 0 : index
    %c0_16 = arith.constant 0 : index
    %32 = vector.load %arg6[%c0_15, %c0_16] : memref<128x128xbf16, #tpu.memory_space<vmem>>, vector<128x128xbf16>
    %cst_17 = arith.constant dense<0.000000e+00> : vector<8x128xf32>
    %33 = tpu.matmul %31, %32, %cst_17 {dimension_numbers = #tpu.dot_dimension_numbers<[1], [0], [0], [1], [0, 0, 1, 1], [], []>} : vector<8x128xbf16>, vector<128x128xbf16>, vector<8x128xf32> -> vector<8x128xf32>
    %c0_18 = arith.constant 0 : index
    %c0_19 = arith.constant 0 : index
    %34 = vector.load %arg7[%c0_18, %c0_19] : memref<1x128xf32, #tpu.memory_space<vmem>>, vector<1x128xf32>
    %35 = vector.broadcast %34 : vector<1x128xf32> to vector<8x128xf32>
    %36 = arith.addf %33, %35 : vector<8x128xf32>
    %37 = arith.truncf %36 : vector<8x128xf32> to vector<8x128xbf16>
    %c0_20 = arith.constant 0 : index
    %c0_21 = arith.constant 0 : index
    %38 = vector.load %arg8[%c0_20, %c0_21] : memref<8x128xbf16, #tpu.memory_space<vmem>>, vector<8x128xbf16>
    tpu.vector_store %arg8[%c0_20, %c0_21], %37 {strides = array<i32>} : memref<8x128xbf16, #tpu.memory_space<vmem>>, vector<8x128xbf16>,
    return
  }
  func.func @transform_0(%arg0: i32) -> (i32, i32) {
    %c0_i32 = arith.constant 0 : i32
    %c0_i32_0 = arith.constant 0 : i32
    return %arg0, %c0_i32 : i32, i32
  }
  func.func @transform_1(%arg0: i32) -> (i32, i32) {
    %c0_i32 = arith.constant 0 : i32
    %c0_i32_0 = arith.constant 0 : i32
    %c0_i32_1 = arith.constant 0 : i32
    return %c0_i32, %c0_i32_0 : i32, i32
  }
  func.func @transform_2(%arg0: i32) -> (i32, i32) {
    %c0_i32 = arith.constant 0 : i32
    %c0_i32_0 = arith.constant 0 : i32
    %c0_i32_1 = arith.constant 0 : i32
    return %c0_i32, %c0_i32_0 : i32, i32
  }
  func.func @transform_3(%arg0: i32) -> (i32, i32) {
    %c0_i32 = arith.constant 0 : i32
    %c0_i32_0 = arith.constant 0 : i32
    %c0_i32_1 = arith.constant 0 : i32
    return %c0_i32, %c0_i32_0 : i32, i32
  }
  func.func @transform_4(%arg0: i32) -> (i32, i32) {
    %c0_i32 = arith.constant 0 : i32
    %c0_i32_0 = arith.constant 0 : i32
    %c0_i32_1 = arith.constant 0 : i32
    return %c0_i32, %c0_i32_0 : i32, i32
  }
  func.func @transform_5(%arg0: i32) -> (i32, i32) {
    %c0_i32 = arith.constant 0 : i32
    %c0_i32_0 = arith.constant 0 : i32
    %c0_i32_1 = arith.constant 0 : i32
    return %c0_i32, %c0_i32_0 : i32, i32
  }
  func.func @transform_6(%arg0: i32) -> (i32, i32) {
    %c0_i32 = arith.constant 0 : i32
    %c0_i32_0 = arith.constant 0 : i32
    %c0_i32_1 = arith.constant 0 : i32
    return %c0_i32, %c0_i32_0 : i32, i32
  }
  func.func @transform_7(%arg0: i32) -> (i32, i32) {
    %c0_i32 = arith.constant 0 : i32
    %c0_i32_0 = arith.constant 0 : i32
    return %arg0, %c0_i32 : i32, i32
  }
}

module attributes {stable_mosaic.version = 11 : i64} {
  func.func @_trend_head_kernel(%arg0: i32, %arg1: memref<8x32xf32, #tpu.memory_space<vmem>>, %arg2: memref<32x128xbf16, #tpu.memory_space<vmem>>, %arg3: memref<1x128xf32, #tpu.memory_space<vmem>>, %arg4: memref<1x128xf32, #tpu.memory_space<vmem>>, %arg5: memref<1x128xf32, #tpu.memory_space<vmem>>, %arg6: memref<128x128xbf16, #tpu.memory_space<vmem>>, %arg7: memref<1x128xf32, #tpu.memory_space<vmem>>, %arg8: memref<8x128xbf16, #tpu.memory_space<vmem>>) attributes {dimension_semantics = [#tpu.dimension_semantics<parallel>], iteration_bounds = array<i64: 1>, scalar_prefetch = 0 : i64, scratch_operands = 0 : i64, tpu.core_type = #tpu.core_type<tc>, window_params = [{transform_indices = @transform_0, window_bounds = array<i64: 8, 32>}, {pipeline_mode = #tpu.pipeline_mode<synchronous>, transform_indices = @transform_1, window_bounds = array<i64: 32, 128>}, {pipeline_mode = #tpu.pipeline_mode<synchronous>, transform_indices = @transform_2, window_bounds = array<i64: 1, 128>}, {pipeline_mode = #tpu.pipeline_mode<synchronous>, transform_indices = @transform_3, window_bounds = array<i64: 1, 128>}, {pipeline_mode = #tpu.pipeline_mode<synchronous>, transform_indices = @transform_4, window_bounds = array<i64: 1, 128>}, {pipeline_mode = #tpu.pipeline_mode<synchronous>, transform_indices = @transform_5, window_bounds = array<i64: 128, 128>}, {pipeline_mode = #tpu.pipeline_mode<synchronous>, transform_indices = @transform_6, window_bounds = array<i64: 1, 128>}, {transform_indices = @transform_7, window_bounds = array<i64: 8, 128>}]} {
    %c0 = arith.constant 0 : index
    %c0_0 = arith.constant 0 : index
    %0 = vector.load %arg1[%c0, %c0_0] : memref<8x32xf32, #tpu.memory_space<vmem>>, vector<8x32xf32>
    %1 = arith.truncf %0 : vector<8x32xf32> to vector<8x32xbf16>
    %c0_1 = arith.constant 0 : index
    %c0_2 = arith.constant 0 : index
    %2 = vector.load %arg2[%c0_1, %c0_2] : memref<32x128xbf16, #tpu.memory_space<vmem>>, vector<32x128xbf16>
    %cst = arith.constant dense<0.000000e+00> : vector<8x128xf32>
    %3 = tpu.matmul %1, %2, %cst {dimension_numbers = #tpu.dot_dimension_numbers<[1], [0], [0], [1], [0, 0, 1, 1], [], []>} : vector<8x32xbf16>, vector<32x128xbf16>, vector<8x128xf32> -> vector<8x128xf32>
    %c0_3 = arith.constant 0 : index
    %c0_4 = arith.constant 0 : index
    %4 = vector.load %arg3[%c0_3, %c0_4] : memref<1x128xf32, #tpu.memory_space<vmem>>, vector<1x128xf32>
    %5 = vector.broadcast %4 : vector<1x128xf32> to vector<8x128xf32>
    %6 = arith.addf %3, %5 : vector<8x128xf32>
    %cst_5 = arith.constant dense<0.000000e+00> : vector<8xf32>
    %7 = vector.multi_reduction <add>, %6, %cst_5 [1] : vector<8x128xf32> to vector<8xf32>
    %8 = vector.shape_cast %7 : vector<8xf32> to vector<8x1xf32>
    %cst_6 = arith.constant 1.280000e+02 : f32
    %9 = vector.broadcast %cst_6 : f32 to vector<8x1xf32>
    %10 = arith.divf %8, %9 : vector<8x1xf32>
    %11 = vector.broadcast %10 : vector<8x1xf32> to vector<8x128xf32>
    %12 = arith.subf %6, %11 : vector<8x128xf32>
    %13 = arith.mulf %12, %12 : vector<8x128xf32>
    %cst_7 = arith.constant dense<0.000000e+00> : vector<8xf32>
    %14 = vector.multi_reduction <add>, %13, %cst_7 [1] : vector<8x128xf32> to vector<8xf32>
    %15 = vector.shape_cast %14 : vector<8xf32> to vector<8x1xf32>
    %cst_8 = arith.constant 1.280000e+02 : f32
    %16 = vector.broadcast %cst_8 : f32 to vector<8x1xf32>
    %17 = arith.divf %15, %16 : vector<8x1xf32>
    %cst_9 = arith.constant 9.99999974E-6 : f32
    %18 = vector.broadcast %cst_9 : f32 to vector<8x1xf32>
    %19 = arith.addf %17, %18 : vector<8x1xf32>
    %20 = math.rsqrt %19 : vector<8x1xf32>
    %21 = vector.broadcast %20 : vector<8x1xf32> to vector<8x128xf32>
    %22 = arith.mulf %12, %21 : vector<8x128xf32>
    %c0_10 = arith.constant 0 : index
    %c0_11 = arith.constant 0 : index
    %23 = vector.load %arg4[%c0_10, %c0_11] : memref<1x128xf32, #tpu.memory_space<vmem>>, vector<1x128xf32>
    %24 = vector.broadcast %23 : vector<1x128xf32> to vector<8x128xf32>
    %25 = arith.mulf %22, %24 : vector<8x128xf32>
    %c0_12 = arith.constant 0 : index
    %c0_13 = arith.constant 0 : index
    %26 = vector.load %arg5[%c0_12, %c0_13] : memref<1x128xf32, #tpu.memory_space<vmem>>, vector<1x128xf32>
    %27 = vector.broadcast %26 : vector<1x128xf32> to vector<8x128xf32>
    %28 = arith.addf %25, %27 : vector<8x128xf32>
    %cst_14 = arith.constant 0.000000e+00 : f32
    %29 = vector.broadcast %cst_14 : f32 to vector<8x128xf32>
    %30 = arith.maximumf %28, %29 : vector<8x128xf32>
    %31 = arith.truncf %30 : vector<8x128xf32> to vector<8x128xbf16>
    %c0_15 = arith.constant 0 : index
    %c0_16 = arith.constant 0 : index
    %32 = vector.load %arg6[%c0_15, %c0_16] : memref<128x128xbf16, #tpu.memory_space<vmem>>, vector<128x128xbf16>
    %cst_17 = arith.constant dense<0.000000e+00> : vector<8x128xf32>
    %33 = tpu.matmul %31, %32, %cst_17 {dimension_numbers = #tpu.dot_dimension_numbers<[1], [0], [0], [1], [0, 0, 1, 1], [], []>} : vector<8x128xbf16>, vector<128x128xbf16>, vector<8x128xf32> -> vector<8x128xf32>
    %c0_18 = arith.constant 0 : index
    %c0_19 = arith.constant 0 : index
    %34 = vector.load %arg7[%c0_18, %c0_19] : memref<1x128xf32, #tpu.memory_space<vmem>>, vector<1x128xf32>
    %35 = vector.broadcast %34 : vector<1x128xf32> to vector<8x128xf32>
    %36 = arith.addf %33, %35 : vector<8x128xf32>
    %37 = arith.truncf %36 : vector<8x128xf32> to vector<8x128xbf16>
    %c0_20 = arith.constant 0 : index
    %c0_21 = arith.constant 0 : index
    %38 = vector.load %arg8[%c0_20, %c0_21] : memref<8x128xbf16, #tpu.memory_space<vmem>>, vector<8x128xbf16>
    tpu.vector_store %arg8[%c0_20, %c0_21], %37 {strides = array<i32>} : memref<8x128xbf16, #tpu.memory_space<vmem>>, vector<8x128xbf16>,
    return
  }
  func.func @transform_0(%arg0: i32) -> (i32, i32) {
    %c0_i32 = arith.constant 0 : i32
    %c0_i32_0 = arith.constant 0 : i32
    return %arg0, %c0_i32 : i32, i32
  }
  func.func @transform_1(%arg0: i32) -> (i32, i32) {
    %c0_i32 = arith.constant 0 : i32
    %c0_i32_0 = arith.constant 0 : i32
    %c0_i32_1 = arith.constant 0 : i32
    return %c0_i32, %c0_i32_0 : i32, i32
  }
  func.func @transform_2(%arg0: i32) -> (i32, i32) {
    %c0_i32 = arith.constant 0 : i32
    %c0_i32_0 = arith.constant 0 : i32
    %c0_i32_1 = arith.constant 0 : i32
    return %c0_i32, %c0_i32_0 : i32, i32
  }
  func.func @transform_3(%arg0: i32) -> (i32, i32) {
    %c0_i32 = arith.constant 0 : i32
    %c0_i32_0 = arith.constant 0 : i32
    %c0_i32_1 = arith.constant 0 : i32
    return %c0_i32, %c0_i32_0 : i32, i32
  }
  func.func @transform_4(%arg0: i32) -> (i32, i32) {
    %c0_i32 = arith.constant 0 : i32
    %c0_i32_0 = arith.constant 0 : i32
    %c0_i32_1 = arith.constant 0 : i32
    return %c0_i32, %c0_i32_0 : i32, i32
  }
  func.func @transform_5(%arg0: i32) -> (i32, i32) {
    %c0_i32 = arith.constant 0 : i32
    %c0_i32_0 = arith.constant 0 : i32
    %c0_i32_1 = arith.constant 0 : i32
    return %c0_i32, %c0_i32_0 : i32, i32
  }
  func.func @transform_6(%arg0: i32) -> (i32, i32) {
    %c0_i32 = arith.constant 0 : i32
    %c0_i32_0 = arith.constant 0 : i32
    %c0_i32_1 = arith.constant 0 : i32
    return %c0_i32, %c0_i32_0 : i32, i32
  }
  func.func @transform_7(%arg0: i32) -> (i32, i32) {
    %c0_i32 = arith.constant 0 : i32
    %c0_i32_0 = arith.constant 0 : i32
    return %arg0, %c0_i32 : i32, i32
  }
}

</mosaic_0001>

<llo_original>
// kernel: tpu_custom_call.1
$region0: #{tpu_custom_call.1}
  #allocation0 [shape = 'u32[]', space=smem, size = 0x4, offset = 0x4, fixed_abs, tag = 'smem constant byte address 0x4 - core index']
  #allocation1 [shape = 'u32[144,128]{1,0:T(1,128)}', space=vmem, size = 0x12000, scoped, tag = 'internal scratch']
  %s0 = inlined_call_operand.hbm [shape: f32[8,32], index: 0, kind: input, shape index: {}]
  %s1 = inlined_call_operand.hbm [shape: bf16[32,128], index: 1, kind: input, shape index: {}]
  %s2 = inlined_call_operand.vmem [shape: f32[1,128], index: 2, kind: input, shape index: {}]
  %s3 = inlined_call_operand.vmem [shape: f32[1,128], index: 3, kind: input, shape index: {}]
  %s4 = inlined_call_operand.vmem [shape: f32[1,128], index: 4, kind: input, shape index: {}]
  %s5 = inlined_call_operand.hbm [shape: bf16[128,128], index: 5, kind: input, shape index: {}]
  %s6 = inlined_call_operand.vmem [shape: f32[1,128], index: 6, kind: input, shape index: {}]
  %s7 = inlined_call_operand.hbm [shape: bf16[8,128], index: 7, kind: output, shape index: {}]
  %s8 = sld [smem:[#allocation0]]
  $region50: #{tpu_custom_call.1} parent=0
    _
  %s10 = ssub.s32 1, %s8
  %s11 = scalar_select 0, %s10, %s8
  $region1: #{tpu_custom_call.1} parent=0
    #allocation2 [shape = 'u8[4096]{0}', space=vmem, size = 0x1000, scoped, tag = 'input window, operand 0, single buffered']
    #allocation3 [shape = 's32[1]{0}', space=sflag, size = 0x4, scoped, tag = 'scoped memory for tpu_custom_call.1']
    #allocation4 [shape = 's32[1]{0}', space=sflag, size = 0x4, scoped, tag = 'scoped memory for tpu_custom_call.1']
    #allocation5 [shape = 'u8[8192]{0}', space=vmem, size = 0x2000, scoped, tag = 'input window, operand 1, single buffered']
    #allocation6 [shape = 's32[1]{0}', space=sflag, size = 0x4, scoped, tag = 'scoped memory for tpu_custom_call.1']
    #allocation7 [shape = 'u8[32768]{0}', space=vmem, size = 0x8000, scoped, tag = 'input window, operand 5, single buffered']
    #allocation8 [shape = 'u8[2048]{0}', space=vmem, size = 0x800, scoped, tag = 'output window, operand 0, single buffered']
    %12 = vsyncpa [#allocation3], 0
    %13 = vsyncpa [#allocation6], 0
    %14 = vsyncpa [#allocation4], 0
    // Predicated region
    $region2: #{tpu_custom_call.1} parent=1 // pred_check
      _
    $region3: #{tpu_custom_call.1} parent=1 // pred_check_branch
      %16 = sbr.rel (0) target = $region5
    $region4: #{tpu_custom_call.1} parent=1 // pred_region
      %s18 = ssub.s32 128, 128
      %19 = vsyncadd [#allocation3], %s18
      %s21 = sshll.u32 [#allocation2], 4
      %s22 = int_to_ptr.vmem [resolvable:$true] %s21
      %24 = dma.hbm_to_vmem [thread:$0]  %s0, 128, %s22, [#allocation3]
    $region5: #{tpu_custom_call.1} parent=1 // pred_fallthru
      _
    // Predicated region
    $region6: #{tpu_custom_call.1} parent=1 // pred_check
      _
    $region7: #{tpu_custom_call.1} parent=1 // pred_check_branch
      %26 = sbr.rel (0) target = $region9
    $region8: #{tpu_custom_call.1} parent=1 // pred_region
      %s28 = ssub.s32 256, 256
      %29 = vsyncadd [#allocation6], %s28
      %s30 = sshll.u32 [#allocation5], 4
      %s31 = int_to_ptr.vmem [resolvable:$true] %s30
      %36 = dma.hbm_to_vmem [thread:$0]  %s1, 256, %s31, [#allocation6], 64, 64, 4
    $region9: #{tpu_custom_call.1} parent=1 // pred_fallthru
      _
    // Predicated region
    $region10: #{tpu_custom_call.1} parent=1 // pred_check
      _
    $region11: #{tpu_custom_call.1} parent=1 // pred_check_branch
      %38 = sbr.rel (0) target = $region13
    $region12: #{tpu_custom_call.1} parent=1 // pred_region
      _
    $region13: #{tpu_custom_call.1} parent=1 // pred_fallthru
      _
    // Predicated region
    $region14: #{tpu_custom_call.1} parent=1 // pred_check
      _
    $region15: #{tpu_custom_call.1} parent=1 // pred_check_branch
      %40 = sbr.rel (0) target = $region17
    $region16: #{tpu_custom_call.1} parent=1 // pred_region
      _
    $region17: #{tpu_custom_call.1} parent=1 // pred_fallthru
      _
    // Predicated region
    $region18: #{tpu_custom_call.1} parent=1 // pred_check
      _
    $region19: #{tpu_custom_call.1} parent=1 // pred_check_branch
      %42 = sbr.rel (0) target = $region21
    $region20: #{tpu_custom_call.1} parent=1 // pred_region
      _
    $region21: #{tpu_custom_call.1} parent=1 // pred_fallthru
      _
    // Predicated region
    $region22: #{tpu_custom_call.1} parent=1 // pred_check
      _
    $region23: #{tpu_custom_call.1} parent=1 // pred_check_branch
      %44 = sbr.rel (0) target = $region25
    $region24: #{tpu_custom_call.1} parent=1 // pred_region
      %s46 = ssub.s32 1024, 1024
      %47 = vsyncadd [#allocation6], %s46
      %s48 = sshll.u32 [#allocation7], 4
      %s49 = int_to_ptr.vmem [resolvable:$true] %s48
      %54 = dma.hbm_to_vmem [thread:$0]  %s5, 1024, %s49, [#allocation6], 64, 64, 4
    $region25: #{tpu_custom_call.1} parent=1 // pred_fallthru
      _
    // Predicated region
    $region26: #{tpu_custom_call.1} parent=1 // pred_check
      _
    $region27: #{tpu_custom_call.1} parent=1 // pred_check_branch
      %56 = sbr.rel (0) target = $region29
    $region28: #{tpu_custom_call.1} parent=1 // pred_region
      _
    $region29: #{tpu_custom_call.1} parent=1 // pred_fallthru
      _
    // Predicated region
    $region30: #{tpu_custom_call.1} parent=1 // pred_check
      _
    $region31: #{tpu_custom_call.1} parent=1 // pred_check_branch
      %58 = sbr.rel (0) target = $region33
    $region32: #{tpu_custom_call.1} parent=1 // pred_region
      %59 = dma.done [#allocation3], 128
    $region33: #{tpu_custom_call.1} parent=1 // pred_fallthru
      _
    // Predicated region
    $region34: #{tpu_custom_call.1} parent=1 // pred_check
      _
    $region35: #{tpu_custom_call.1} parent=1 // pred_check_branch
      %61 = sbr.rel (0) target = $region37
    $region36: #{tpu_custom_call.1} parent=1 // pred_region
      %62 = dma.done [#allocation6], 256
    $region37: #{tpu_custom_call.1} parent=1 // pred_fallthru
      _
    // Predicated region
    $region38: #{tpu_custom_call.1} parent=1 // pred_check
      _
    $region39: #{tpu_custom_call.1} parent=1 // pred_check_branch
      %64 = sbr.rel (0) target = $region41
    $region40: #{tpu_custom_call.1} parent=1 // pred_region
      %65 = dma.done [#allocation6], 1024
    $region41: #{tpu_custom_call.1} parent=1 // pred_fallthru
      _
    %v67 = vld [vmem:[#allocation2] sm:$0xff]
    %v68 = vpack.c.bf16 %v67, %v67
    %v69 = vld [vmem:[#allocation5] sm:$0xf]
    %v70 = vld [vmem:[#allocation5 + $0x4] sm:$0xf]
    %v71 = vld [vmem:[#allocation5 + $0x8] sm:$0xf]
    %v72 = vld [vmem:[#allocation5 + $0xc] sm:$0xf]
    %v73 = vld [vmem:[%s2] sm:$0x1]
    %v75 = vlaneseq
    %v76 = vshrl.u32 %v75, 7
    %v77 = vsub.s32 0, %v76
    %v78 = vrot.slane %v73, %v77
    %v84 = vunpack.c.l.b16 %v69
    %v85 = vunpack.c.l.b16 %v70
    %v86 = vunpack.c.l.b16 %v71
    %v87 = vunpack.c.l.b16 %v72
    %v88 = vpack.c.b16 %v85, %v84
    %v89 = vpack.c.b16 %v87, %v86
    %vm92 = vcmask 261120
    %v94 = vsel %vm92, %v68, 0
    %96 = vmatprep.subr.bf16.mxu0 0
    %97 = vmatpush1.bf16.msra.mxu0 %v88
    %98 = vmatprep.subr.bf16.mxu0 0
    %99 = vmatpush1.bf16.msra.mxu0 %v89
    %100 = vmatprep.subr.bf16.mxu0 0
    %101 = vmatpush1.bf16.msra.mxu0 0
    %102 = vmatprep.subr.bf16.mxu0 0
    %103 = vmatpush1.bf16.msra.mxu0 0
    %104 = vmatprep.subr.bf16.mxu0 0
    %105 = vmatpush1.bf16.msra.mxu0 0
    %106 = vmatprep.subr.bf16.mxu0 0
    %107 = vmatpush1.bf16.msra.mxu0 0
    %108 = vmatprep.subr.bf16.mxu0 0
    %109 = vmatpush1.bf16.msra.mxu0 0
    %110 = vmatprep.subr.bf16.mxu0 0
    %111 = vmatpush1.bf16.msra.mxu0 0
    %112 = vmatprep.subr.bf16.mxu0 0
    %113 = vmatpush1.bf16.msra.mxu0 0
    %114 = vmatprep.subr.bf16.mxu0 0
    %115 = vmatpush1.bf16.msra.mxu0 0
    %116 = vmatprep.subr.bf16.mxu0 0
    %117 = vmatpush1.bf16.msra.mxu0 0
    %118 = vmatprep.subr.bf16.mxu0 0
    %119 = vmatpush1.bf16.msra.mxu0 0
    %120 = vmatprep.subr.bf16.mxu0 0
    %121 = vmatpush1.bf16.msra.mxu0 0
    %122 = vmatprep.subr.bf16.mxu0 0
    %123 = vmatpush1.bf16.msra.mxu0 0
    %124 = vmatprep.subr.bf16.mxu0 0
    %125 = vmatpush1.bf16.msra.mxu0 0
    %126 = vmatprep.subr.bf16.mxu0 0
    %127 = vmatpush1.bf16.msra.mxu0 0
    %128 = vmatprep.mubr.bf16.mxu0 0
    %129 = vmatmul.mubr.bf16.gmra.mrb[0].mxu0 %v94
    %v130 = vpop.f32.mrb[0].mxu0
    %v131 = vadd.f32 %v78, %v130
    %v132 = vpop.f32.mrb[0].mxu0
    %v133 = vpop.f32.mrb[0].mxu0
    %v134 = vpop.f32.mrb[0].mxu0
    %135 = vdwg.mxu0
    %136 = vadd.xlane.f32.xlu0 %v131
    %v137 = vpop.xlane.xlu0 %136
    %v138 = vrcp.pop 128.0
    %v139 = vmul.f32 %v137, %v138
    %v140 = vsub.f32 %v131, %v139
    %v141 = vmul.f32 %v140, %v140
    %142 = vadd.xlane.f32.xlu0 %v141
    %v143 = vpop.xlane.xlu0 %142
    %v144 = vmul.f32 %v143, %v138
    %v145 = vadd.f32 %v144, 1e-05
    %v146 = vrsqrt.pop %v145
    %v147 = vmul.f32 %v140, %v146
    %v148 = vld [vmem:[%s3] sm:$0x1]
    %v150 = vlaneseq
    %v151 = vshrl.u32 %v150, 7
    %v152 = vsub.s32 0, %v151
    %v153 = vrot.slane %v148, %v152
    %v155 = vmul.f32 %v147, %v153
    %v156 = vld [vmem:[%s4] sm:$0x1]
    %v158 = vlaneseq
    %v159 = vshrl.u32 %v158, 7
    %v160 = vsub.s32 0, %v159
    %v161 = vrot.slane %v156, %v160
    %v163 = vadd.f32 %v155, %v161
    %v164 = vmax.f32 %v163, 0.0
    %v165 = vpack.c.bf16 %v164, %v164
    %v166 = vld [vmem:[#allocation7] sm:$0xf]
    %v167 = vld [vmem:[#allocation7 + $0x4] sm:$0xf]
    %v168 = vld [vmem:[#allocation7 + $0x8] sm:$0xf]
    %v169 = vld [vmem:[#allocation7 + $0xc] sm:$0xf]
    %v170 = vld [vmem:[#allocation7 + $0x10] sm:$0xf]
    %v171 = vld [vmem:[#allocation7 + $0x14] sm:$0xf]
    %v172 = vld [vmem:[#allocation7 + $0x18] sm:$0xf]
    %v173 = vld [vmem:[#allocation7 + $0x1c] sm:$0xf]
    %v174 = vld [vmem:[#allocation7 + $0x20] sm:$0xf]
    %v175 = vld [vmem:[#allocation7 + $0x24] sm:$0xf]
    %v176 = vld [vmem:[#allocation7 + $0x28] sm:$0xf]
    %v177 = vld [vmem:[#allocation7 + $0x2c] sm:$0xf]
    %v178 = vld [vmem:[#allocation7 + $0x30] sm:$0xf]
    %v179 = vld [vmem:[#allocation7 + $0x34] sm:$0xf]
    %v180 = vld [vmem:[#allocation7 + $0x38] sm:$0xf]
    %v181 = vld [vmem:[#allocation7 + $0x3c] sm:$0xf]
    %v182 = vld [vmem:[%s6] sm:$0x1]
    %v184 = vlaneseq
    %v185 = vshrl.u32 %v184, 7
    %v186 = vsub.s32 0, %v185
    %v187 = vrot.slane %v182, %v186
    %v205 = vunpack.c.l.b16 %v166
    %v206 = vunpack.c.l.b16 %v167
    %v207 = vunpack.c.l.b16 %v168
    %v208 = vunpack.c.l.b16 %v169
    %v209 = vunpack.c.l.b16 %v170
    %v210 = vunpack.c.l.b16 %v171
    %v211 = vunpack.c.l.b16 %v172
    %v212 = vunpack.c.l.b16 %v173
    %v213 = vunpack.c.l.b16 %v174
    %v214 = vunpack.c.l.b16 %v175
    %v215 = vunpack.c.l.b16 %v176
    %v216 = vunpack.c.l.b16 %v177
    %v217 = vunpack.c.l.b16 %v178
    %v218 = vunpack.c.l.b16 %v179
    %v219 = vunpack.c.l.b16 %v180
    %v220 = vunpack.c.l.b16 %v181
    %v221 = vpack.c.b16 %v206, %v205
    %v222 = vpack.c.b16 %v208, %v207
    %v223 = vpack.c.b16 %v210, %v209
    %v224 = vpack.c.b16 %v212, %v211
    %v225 = vpack.c.b16 %v214, %v213
    %v226 = vpack.c.b16 %v216, %v215
    %v227 = vpack.c.b16 %v218, %v217
    %v228 = vpack.c.b16 %v220, %v219
    %237 = vmatprep.subr.bf16.mxu0 0
    %238 = vmatpush1.bf16.msra.mxu0 %v221
    %239 = vmatprep.subr.bf16.mxu0 0
    %240 = vmatpush1.bf16.msra.mxu0 %v222
    %241 = vmatprep.subr.bf16.mxu0 0
    %242 = vmatpush1.bf16.msra.mxu0 %v223
    %243 = vmatprep.subr.bf16.mxu0 0
    %244 = vmatpush1.bf16.msra.mxu0 %v224
    %245 = vmatprep.subr.bf16.mxu0 0
    %246 = vmatpush1.bf16.msra.mxu0 %v225
    %247 = vmatprep.subr.bf16.mxu0 0
    %248 = vmatpush1.bf16.msra.mxu0 %v226
    %249 = vmatprep.subr.bf16.mxu0 0
    %250 = vmatpush1.bf16.msra.mxu0 %v227
    %251 = vmatprep.subr.bf16.mxu0 0
    %252 = vmatpush1.bf16.msra.mxu0 %v228
    %253 = vmatprep.subr.bf16.mxu0 0
    %254 = vmatpush1.bf16.msra.mxu0 0
    %255 = vmatprep.subr.bf16.mxu0 0
    %256 = vmatpush1.bf16.msra.mxu0 0
    %257 = vmatprep.subr.bf16.mxu0 0
    %258 = vmatpush1.bf16.msra.mxu0 0
    %259 = vmatprep.subr.bf16.mxu0 0
    %260 = vmatpush1.bf16.msra.mxu0 0
    %261 = vmatprep.subr.bf16.mxu0 0
    %262 = vmatpush1.bf16.msra.mxu0 0
    %263 = vmatprep.subr.bf16.mxu0 0
    %264 = vmatpush1.bf16.msra.mxu0 0
    %265 = vmatprep.subr.bf16.mxu0 0
    %266 = vmatpush1.bf16.msra.mxu0 0
    %267 = vmatprep.subr.bf16.mxu0 0
    %268 = vmatpush1.bf16.msra.mxu0 0
    %269 = vmatprep.mubr.bf16.mxu0 0
    %270 = vmatmul.mubr.bf16.gmra.mrb[0].mxu0 %v165
    %v271 = vpop.f32.mrb[0].mxu0
    %v272 = vadd.f32 %v187, %v271
    %v273 = vpop.f32.mrb[0].mxu0
    %v274 = vpop.f32.mrb[0].mxu0
    %v275 = vpop.f32.mrb[0].mxu0
    %276 = vdwg.mxu0
    %v277 = vpack.c.bf16 %v272, %v272
    %278 = vst [vmem:[#allocation8] sm:$0xf] %v277
    // Predicated region
    $region42: #{tpu_custom_call.1} parent=1 // pred_check
      _
    $region43: #{tpu_custom_call.1} parent=1 // pred_check_branch
      %280 = sbr.rel (0) target = $region45
    $region44: #{tpu_custom_call.1} parent=1 // pred_region
      %s282 = ssub.s32 64, 64
      %283 = vsyncadd [#allocation4], %s282
      %s285 = sshll.u32 [#allocation8], 4
      %s286 = int_to_ptr.vmem [resolvable:$true] %s285
      %288 = dma.vmem_to_hbm [thread:$0]  %s286, 64, %s7, [#allocation4]
    $region45: #{tpu_custom_call.1} parent=1 // pred_fallthru
      _
    // Predicated region
    $region46: #{tpu_custom_call.1} parent=1 // pred_check
      _
    $region47: #{tpu_custom_call.1} parent=1 // pred_check_branch
      %290 = sbr.rel (0) target = $region49
    $region48: #{tpu_custom_call.1} parent=1 // pred_region
      %291 = dma.done [#allocation4], 64
    $region49: #{tpu_custom_call.1} parent=1 // pred_fallthru
      _
    %292 = vsyncpa [#allocation3], 1
    %293 = vsyncpa [#allocation6], 1
    %294 = vsyncpa [#allocation4], 1

// kernel: tpu_custom_call.1
$region0: #{tpu_custom_call.1}
  #allocation0 [shape = 'u32[]', space=smem, size = 0x4, offset = 0x4, fixed_abs, tag = 'smem constant byte address 0x4 - core index']
  #allocation1 [shape = 'u32[144,128]{1,0:T(1,128)}', space=vmem, size = 0x12000, scoped, tag = 'internal scratch']
  %s0 = inlined_call_operand.hbm [shape: f32[8,32], index: 0, kind: input, shape index: {}]
  %s1 = inlined_call_operand.hbm [shape: bf16[32,128], index: 1, kind: input, shape index: {}]
  %s2 = inlined_call_operand.vmem [shape: f32[1,128], index: 2, kind: input, shape index: {}]
  %s3 = inlined_call_operand.vmem [shape: f32[1,128], index: 3, kind: input, shape index: {}]
  %s4 = inlined_call_operand.vmem [shape: f32[1,128], index: 4, kind: input, shape index: {}]
  %s5 = inlined_call_operand.hbm [shape: bf16[128,128], index: 5, kind: input, shape index: {}]
  %s6 = inlined_call_operand.vmem [shape: f32[1,128], index: 6, kind: input, shape index: {}]
  %s7 = inlined_call_operand.hbm [shape: bf16[8,128], index: 7, kind: output, shape index: {}]
  %s8 = sld [smem:[#allocation0]]
  $region50: #{tpu_custom_call.1} parent=0
    _
  %s10 = ssub.s32 1, %s8
  %s11 = scalar_select 0, %s10, %s8
  $region1: #{tpu_custom_call.1} parent=0
    #allocation2 [shape = 'u8[4096]{0}', space=vmem, size = 0x1000, scoped, tag = 'input window, operand 0, single buffered']
    #allocation3 [shape = 's32[1]{0}', space=sflag, size = 0x4, scoped, tag = 'scoped memory for tpu_custom_call.1']
    #allocation4 [shape = 's32[1]{0}', space=sflag, size = 0x4, scoped, tag = 'scoped memory for tpu_custom_call.1']
    #allocation5 [shape = 'u8[8192]{0}', space=vmem, size = 0x2000, scoped, tag = 'input window, operand 1, single buffered']
    #allocation6 [shape = 's32[1]{0}', space=sflag, size = 0x4, scoped, tag = 'scoped memory for tpu_custom_call.1']
    #allocation7 [shape = 'u8[32768]{0}', space=vmem, size = 0x8000, scoped, tag = 'input window, operand 5, single buffered']
    #allocation8 [shape = 'u8[2048]{0}', space=vmem, size = 0x800, scoped, tag = 'output window, operand 0, single buffered']
    %12 = vsyncpa [#allocation3], 0
    %13 = vsyncpa [#allocation6], 0
    %14 = vsyncpa [#allocation4], 0
    // Predicated region
    $region2: #{tpu_custom_call.1} parent=1 // pred_check
      _
    $region3: #{tpu_custom_call.1} parent=1 // pred_check_branch
      %16 = sbr.rel (0) target = $region5
    $region4: #{tpu_custom_call.1} parent=1 // pred_region
      %s18 = ssub.s32 128, 128
      %19 = vsyncadd [#allocation3], %s18
      %s21 = sshll.u32 [#allocation2], 4
      %s22 = int_to_ptr.vmem [resolvable:$true] %s21
      %24 = dma.hbm_to_vmem [thread:$0]  %s0, 128, %s22, [#allocation3]
    $region5: #{tpu_custom_call.1} parent=1 // pred_fallthru
      _
    // Predicated region
    $region6: #{tpu_custom_call.1} parent=1 // pred_check
      _
    $region7: #{tpu_custom_call.1} parent=1 // pred_check_branch
      %26 = sbr.rel (0) target = $region9
    $region8: #{tpu_custom_call.1} parent=1 // pred_region
      %s28 = ssub.s32 256, 256
      %29 = vsyncadd [#allocation6], %s28
      %s30 = sshll.u32 [#allocation5], 4
      %s31 = int_to_ptr.vmem [resolvable:$true] %s30
      %36 = dma.hbm_to_vmem [thread:$0]  %s1, 256, %s31, [#allocation6], 64, 64, 4
    $region9: #{tpu_custom_call.1} parent=1 // pred_fallthru
      _
    // Predicated region
    $region10: #{tpu_custom_call.1} parent=1 // pred_check
      _
    $region11: #{tpu_custom_call.1} parent=1 // pred_check_branch
      %38 = sbr.rel (0) target = $region13
    $region12: #{tpu_custom_call.1} parent=1 // pred_region
      _
    $region13: #{tpu_custom_call.1} parent=1 // pred_fallthru
      _
    // Predicated region
    $region14: #{tpu_custom_call.1} parent=1 // pred_check
      _
    $region15: #{tpu_custom_call.1} parent=1 // pred_check_branch
      %40 = sbr.rel (0) target = $region17
    $region16: #{tpu_custom_call.1} parent=1 // pred_region
      _
    $region17: #{tpu_custom_call.1} parent=1 // pred_fallthru
      _
    // Predicated region
    $region18: #{tpu_custom_call.1} parent=1 // pred_check
      _
    $region19: #{tpu_custom_call.1} parent=1 // pred_check_branch
      %42 = sbr.rel (0) target = $region21
    $region20: #{tpu_custom_call.1} parent=1 // pred_region
      _
    $region21: #{tpu_custom_call.1} parent=1 // pred_fallthru
      _
    // Predicated region
    $region22: #{tpu_custom_call.1} parent=1 // pred_check
      _
    $region23: #{tpu_custom_call.1} parent=1 // pred_check_branch
      %44 = sbr.rel (0) target = $region25
    $region24: #{tpu_custom_call.1} parent=1 // pred_region
      %s46 = ssub.s32 1024, 1024
      %47 = vsyncadd [#allocation6], %s46
      %s48 = sshll.u32 [#allocation7], 4
      %s49 = int_to_ptr.vmem [resolvable:$true] %s48
      %54 = dma.hbm_to_vmem [thread:$0]  %s5, 1024, %s49, [#allocation6], 64, 64, 4
    $region25: #{tpu_custom_call.1} parent=1 // pred_fallthru
      _
    // Predicated region
    $region26: #{tpu_custom_call.1} parent=1 // pred_check
      _
    $region27: #{tpu_custom_call.1} parent=1 // pred_check_branch
      %56 = sbr.rel (0) target = $region29
    $region28: #{tpu_custom_call.1} parent=1 // pred_region
      _
    $region29: #{tpu_custom_call.1} parent=1 // pred_fallthru
      _
    // Predicated region
    $region30: #{tpu_custom_call.1} parent=1 // pred_check
      _
    $region31: #{tpu_custom_call.1} parent=1 // pred_check_branch
      %58 = sbr.rel (0) target = $region33
    $region32: #{tpu_custom_call.1} parent=1 // pred_region
      %59 = dma.done [#allocation3], 128
    $region33: #{tpu_custom_call.1} parent=1 // pred_fallthru
      _
    // Predicated region
    $region34: #{tpu_custom_call.1} parent=1 // pred_check
      _
    $region35: #{tpu_custom_call.1} parent=1 // pred_check_branch
      %61 = sbr.rel (0) target = $region37
    $region36: #{tpu_custom_call.1} parent=1 // pred_region
      %62 = dma.done [#allocation6], 256
    $region37: #{tpu_custom_call.1} parent=1 // pred_fallthru
      _
    // Predicated region
    $region38: #{tpu_custom_call.1} parent=1 // pred_check
      _
    $region39: #{tpu_custom_call.1} parent=1 // pred_check_branch
      %64 = sbr.rel (0) target = $region41
    $region40: #{tpu_custom_call.1} parent=1 // pred_region
      %65 = dma.done [#allocation6], 1024
    $region41: #{tpu_custom_call.1} parent=1 // pred_fallthru
      _
    %v67 = vld [vmem:[#allocation2] sm:$0xff]
    %v68 = vpack.c.bf16 %v67, %v67
    %v69 = vld [vmem:[#allocation5] sm:$0xf]
    %v70 = vld [vmem:[#allocation5 + $0x4] sm:$0xf]
    %v71 = vld [vmem:[#allocation5 + $0x8] sm:$0xf]
    %v72 = vld [vmem:[#allocation5 + $0xc] sm:$0xf]
    %v73 = vld [vmem:[%s2] sm:$0x1]
    %v75 = vlaneseq
    %v76 = vshrl.u32 %v75, 7
    %v77 = vsub.s32 0, %v76
    %v78 = vrot.slane %v73, %v77
    %v84 = vunpack.c.l.b16 %v69
    %v85 = vunpack.c.l.b16 %v70
    %v86 = vunpack.c.l.b16 %v71
    %v87 = vunpack.c.l.b16 %v72
    %v88 = vpack.c.b16 %v85, %v84
    %v89 = vpack.c.b16 %v87, %v86
    %vm92 = vcmask 261120
    %v94 = vsel %vm92, %v68, 0
    %96 = vmatprep.subr.bf16.mxu0 0
    %97 = vmatpush1.bf16.msra.mxu0 %v88
    %98 = vmatprep.subr.bf16.mxu0 0
    %99 = vmatpush1.bf16.msra.mxu0 %v89
    %100 = vmatprep.subr.bf16.mxu0 0
    %101 = vmatpush1.bf16.msra.mxu0 0
    %102 = vmatprep.subr.bf16.mxu0 0
    %103 = vmatpush1.bf16.msra.mxu0 0
    %104 = vmatprep.subr.bf16.mxu0 0
    %105 = vmatpush1.bf16.msra.mxu0 0
    %106 = vmatprep.subr.bf16.mxu0 0
    %107 = vmatpush1.bf16.msra.mxu0 0
    %108 = vmatprep.subr.bf16.mxu0 0
    %109 = vmatpush1.bf16.msra.mxu0 0
    %110 = vmatprep.subr.bf16.mxu0 0
    %111 = vmatpush1.bf16.msra.mxu0 0
    %112 = vmatprep.subr.bf16.mxu0 0
    %113 = vmatpush1.bf16.msra.mxu0 0
    %114 = vmatprep.subr.bf16.mxu0 0
    %115 = vmatpush1.bf16.msra.mxu0 0
    %116 = vmatprep.subr.bf16.mxu0 0
    %117 = vmatpush1.bf16.msra.mxu0 0
    %118 = vmatprep.subr.bf16.mxu0 0
    %119 = vmatpush1.bf16.msra.mxu0 0
    %120 = vmatprep.subr.bf16.mxu0 0
    %121 = vmatpush1.bf16.msra.mxu0 0
    %122 = vmatprep.subr.bf16.mxu0 0
    %123 = vmatpush1.bf16.msra.mxu0 0
    %124 = vmatprep.subr.bf16.mxu0 0
    %125 = vmatpush1.bf16.msra.mxu0 0
    %126 = vmatprep.subr.bf16.mxu0 0
    %127 = vmatpush1.bf16.msra.mxu0 0
    %128 = vmatprep.mubr.bf16.mxu0 0
    %129 = vmatmul.mubr.bf16.gmra.mrb[0].mxu0 %v94
    %v130 = vpop.f32.mrb[0].mxu0
    %v131 = vadd.f32 %v78, %v130
    %v132 = vpop.f32.mrb[0].mxu0
    %v133 = vpop.f32.mrb[0].mxu0
    %v134 = vpop.f32.mrb[0].mxu0
    %135 = vdwg.mxu0
    %136 = vadd.xlane.f32.xlu0 %v131
    %v137 = vpop.xlane.xlu0 %136
    %v138 = vrcp.pop 128.0
    %v139 = vmul.f32 %v137, %v138
    %v140 = vsub.f32 %v131, %v139
    %v141 = vmul.f32 %v140, %v140
    %142 = vadd.xlane.f32.xlu0 %v141
    %v143 = vpop.xlane.xlu0 %142
    %v144 = vmul.f32 %v143, %v138
    %v145 = vadd.f32 %v144, 1e-05
    %v146 = vrsqrt.pop %v145
    %v147 = vmul.f32 %v140, %v146
    %v148 = vld [vmem:[%s3] sm:$0x1]
    %v150 = vlaneseq
    %v151 = vshrl.u32 %v150, 7
    %v152 = vsub.s32 0, %v151
    %v153 = vrot.slane %v148, %v152
    %v155 = vmul.f32 %v147, %v153
    %v156 = vld [vmem:[%s4] sm:$0x1]
    %v158 = vlaneseq
    %v159 = vshrl.u32 %v158, 7
    %v160 = vsub.s32 0, %v159
    %v161 = vrot.slane %v156, %v160
    %v163 = vadd.f32 %v155, %v161
    %v164 = vmax.f32 %v163, 0.0
    %v165 = vpack.c.bf16 %v164, %v164
    %v166 = vld [vmem:[#allocation7] sm:$0xf]
    %v167 = vld [vmem:[#allocation7 + $0x4] sm:$0xf]
    %v168 = vld [vmem:[#allocation7 + $0x8] sm:$0xf]
    %v169 = vld [vmem:[#allocation7 + $0xc] sm:$0xf]
    %v170 = vld [vmem:[#allocation7 + $0x10] sm:$0xf]
    %v171 = vld [vmem:[#allocation7 + $0x14] sm:$0xf]
    %v172 = vld [vmem:[#allocation7 + $0x18] sm:$0xf]
    %v173 = vld [vmem:[#allocation7 + $0x1c] sm:$0xf]
    %v174 = vld [vmem:[#allocation7 + $0x20] sm:$0xf]
    %v175 = vld [vmem:[#allocation7 + $0x24] sm:$0xf]
    %v176 = vld [vmem:[#allocation7 + $0x28] sm:$0xf]
    %v177 = vld [vmem:[#allocation7 + $0x2c] sm:$0xf]
    %v178 = vld [vmem:[#allocation7 + $0x30] sm:$0xf]
    %v179 = vld [vmem:[#allocation7 + $0x34] sm:$0xf]
    %v180 = vld [vmem:[#allocation7 + $0x38] sm:$0xf]
    %v181 = vld [vmem:[#allocation7 + $0x3c] sm:$0xf]
    %v182 = vld [vmem:[%s6] sm:$0x1]
    %v184 = vlaneseq
    %v185 = vshrl.u32 %v184, 7
    %v186 = vsub.s32 0, %v185
    %v187 = vrot.slane %v182, %v186
    %v205 = vunpack.c.l.b16 %v166
    %v206 = vunpack.c.l.b16 %v167
    %v207 = vunpack.c.l.b16 %v168
    %v208 = vunpack.c.l.b16 %v169
    %v209 = vunpack.c.l.b16 %v170
    %v210 = vunpack.c.l.b16 %v171
    %v211 = vunpack.c.l.b16 %v172
    %v212 = vunpack.c.l.b16 %v173
    %v213 = vunpack.c.l.b16 %v174
    %v214 = vunpack.c.l.b16 %v175
    %v215 = vunpack.c.l.b16 %v176
    %v216 = vunpack.c.l.b16 %v177
    %v217 = vunpack.c.l.b16 %v178
    %v218 = vunpack.c.l.b16 %v179
    %v219 = vunpack.c.l.b16 %v180
    %v220 = vunpack.c.l.b16 %v181
    %v221 = vpack.c.b16 %v206, %v205
    %v222 = vpack.c.b16 %v208, %v207
    %v223 = vpack.c.b16 %v210, %v209
    %v224 = vpack.c.b16 %v212, %v211
    %v225 = vpack.c.b16 %v214, %v213
    %v226 = vpack.c.b16 %v216, %v215
    %v227 = vpack.c.b16 %v218, %v217
    %v228 = vpack.c.b16 %v220, %v219
    %237 = vmatprep.subr.bf16.mxu0 0
    %238 = vmatpush1.bf16.msra.mxu0 %v221
    %239 = vmatprep.subr.bf16.mxu0 0
    %240 = vmatpush1.bf16.msra.mxu0 %v222
    %241 = vmatprep.subr.bf16.mxu0 0
    %242 = vmatpush1.bf16.msra.mxu0 %v223
    %243 = vmatprep.subr.bf16.mxu0 0
    %244 = vmatpush1.bf16.msra.mxu0 %v224
    %245 = vmatprep.subr.bf16.mxu0 0
    %246 = vmatpush1.bf16.msra.mxu0 %v225
    %247 = vmatprep.subr.bf16.mxu0 0
    %248 = vmatpush1.bf16.msra.mxu0 %v226
    %249 = vmatprep.subr.bf16.mxu0 0
    %250 = vmatpush1.bf16.msra.mxu0 %v227
    %251 = vmatprep.subr.bf16.mxu0 0
    %252 = vmatpush1.bf16.msra.mxu0 %v228
    %253 = vmatprep.subr.bf16.mxu0 0
    %254 = vmatpush1.bf16.msra.mxu0 0
    %255 = vmatprep.subr.bf16.mxu0 0
    %256 = vmatpush1.bf16.msra.mxu0 0
    %257 = vmatprep.subr.bf16.mxu0 0
    %258 = vmatpush1.bf16.msra.mxu0 0
    %259 = vmatprep.subr.bf16.mxu0 0
    %260 = vmatpush1.bf16.msra.mxu0 0
    %261 = vmatprep.subr.bf16.mxu0 0
    %262 = vmatpush1.bf16.msra.mxu0 0
    %263 = vmatprep.subr.bf16.mxu0 0
    %264 = vmatpush1.bf16.msra.mxu0 0
    %265 = vmatprep.subr.bf16.mxu0 0
    %266 = vmatpush1.bf16.msra.mxu0 0
    %267 = vmatprep.subr.bf16.mxu0 0
    %268 = vmatpush1.bf16.msra.mxu0 0
    %269 = vmatprep.mubr.bf16.mxu0 0
    %270 = vmatmul.mubr.bf16.gmra.mrb[0].mxu0 %v165
    %v271 = vpop.f32.mrb[0].mxu0
    %v272 = vadd.f32 %v187, %v271
    %v273 = vpop.f32.mrb[0].mxu0
    %v274 = vpop.f32.mrb[0].mxu0
    %v275 = vpop.f32.mrb[0].mxu0
    %276 = vdwg.mxu0
    %v277 = vpack.c.bf16 %v272, %v272
    %278 = vst [vmem:[#allocation8] sm:$0xf] %v277
    // Predicated region
    $region42: #{tpu_custom_call.1} parent=1 // pred_check
      _
    $region43: #{tpu_custom_call.1} parent=1 // pred_check_branch
      %280 = sbr.rel (0) target = $region45
    $region44: #{tpu_custom_call.1} parent=1 // pred_region
      %s282 = ssub.s32 64, 64
      %283 = vsyncadd [#allocation4], %s282
      %s285 = sshll.u32 [#allocation8], 4
      %s286 = int_to_ptr.vmem [resolvable:$true] %s285
      %288 = dma.vmem_to_hbm [thread:$0]  %s286, 64, %s7, [#allocation4]
    $region45: #{tpu_custom_call.1} parent=1 // pred_fallthru
      _
    // Predicated region
    $region46: #{tpu_custom_call.1} parent=1 // pred_check
      _
    $region47: #{tpu_custom_call.1} parent=1 // pred_check_branch
      %290 = sbr.rel (0) target = $region49
    $region48: #{tpu_custom_call.1} parent=1 // pred_region
      %291 = dma.done [#allocation4], 64
    $region49: #{tpu_custom_call.1} parent=1 // pred_fallthru
      _
    %292 = vsyncpa [#allocation3], 1
    %293 = vsyncpa [#allocation6], 1
    %294 = vsyncpa [#allocation4], 1

</llo_original>
